<compile_context>
chip_gen: v6e
topology: v6e:2x2x1
jax: 0.10.0
libtpu: 0.0.40
codegen_flags: <defaults>
</compile_context>

<pallas_src>
import functools

import jax
import jax.numpy as jnp
from jax.experimental import pallas as pl
from jax.experimental.pallas import tpu as pltpu

_LANES = 128
_SUBLANES = 8


def _round_up(n, m):
    return (n + m - 1) // m * m


def qnet_multihead_kernel(x_ref, w1_ref, b1_ref, w2_ref, b2_ref,
                          w3_ref, b3_ref, wh_ref, bh_ref, out_ref):
    """One batch tile of relu(relu(relu(x@W1+b1)@W2+b2)@W3+b3) @ Wh + bh.

    Weights are bf16 (MXU operands) with f32 accumulation.  Bias-add / ReLU
    run in the dtype the biases were prepared in (bf16 on v6e/v7x, f32 on
    v5e / older); the final head bias-add and the store stay f32.
    """
    ew = b1_ref.dtype
    x = x_ref[...].astype(jnp.bfloat16)
    h1 = jnp.maximum(
        jnp.dot(x, w1_ref[...], preferred_element_type=jnp.float32).astype(ew)
        + b1_ref[...], 0.0).astype(jnp.bfloat16)
    h2 = jnp.maximum(
        jnp.dot(h1, w2_ref[...], preferred_element_type=jnp.float32).astype(ew)
        + b2_ref[...], 0.0).astype(jnp.bfloat16)
    h3 = jnp.maximum(
        jnp.dot(h2, w3_ref[...], preferred_element_type=jnp.float32).astype(ew)
        + b3_ref[...], 0.0).astype(jnp.bfloat16)        # F.relu(self.model(x))
    out_ref[...] = (jnp.dot(h3, wh_ref[...], preferred_element_type=jnp.float32)
                    + bh_ref[...])


def fuse_head_conv(conv_w, conv_b, action_dim, num_heads):
    """Fuse the grouped 1x1 Conv1d head into a dense (64, out_dim) matmul.

    conv_w: (action_dim*num_heads, 64, 1) PyTorch Conv1d weight (groups=num_heads)
    conv_b: (action_dim*num_heads,)

    The conv input is the same 64-dim feature replicated per head, so output
    channel c is feat @ conv_w[c, :, 0] + conv_b[c].  The module then reads it
    via .view(-1, action_dim, num_heads).permute(2, 0, 1), i.e.
    final[h, b, a] = conv_out[b, a*num_heads + h].  We pre-permute the fused
    columns into (head, action)-major order so the kernel output can be read
    back with a contiguous (free) reshape instead of a strided gather.
    """
    out_dim = action_dim * num_heads
    j = jnp.arange(out_dim)
    src = (j % action_dim) * num_heads + (j // action_dim)
    wh = jnp.transpose(conv_w[:, :, 0][src], (1, 0))   # (64, out_dim)
    bh = conv_b[src]                                    # (out_dim,)
    return wh, bh


def elementwise_dtype_for_backend():
    """bf16 bias/ReLU on v6e/v7x (packed bf16 VPU); f32 elsewhere (v5e and
    older have no bf16 VPU, so bf16 elementwise would be emulated)."""
    try:
        kind = jax.devices()[0].device_kind.lower()
    except Exception:
        return jnp.float32
    if "v6" in kind or "v7" in kind or "trillium" in kind:
        return jnp.bfloat16
    return jnp.float32


def prepare_params(raw_params, action_dim, num_heads, ew_dtype=jnp.float32):
    """One-time parameter prep (hoisted out of the jitted forward): fuse the
    grouped 1x1 conv head into a dense pre-permuted matmul, cast MXU operands
    to bf16, and lay biases out as (1, N) rows in the elementwise dtype."""
    w1, b1, w2, b2, w3, b3, conv_w, conv_b = raw_params
    wh, bh = fuse_head_conv(conv_w, conv_b, action_dim, num_heads)
    return (
        w1.astype(jnp.bfloat16), b1.reshape(1, -1).astype(ew_dtype),
        w2.astype(jnp.bfloat16), b2.reshape(1, -1).astype(ew_dtype),
        w3.astype(jnp.bfloat16), b3.reshape(1, -1).astype(ew_dtype),
        wh.astype(jnp.bfloat16), bh.reshape(1, -1).astype(jnp.float32),
    )


def _choose_tile_b(B, tile_b):
    tile_b = _round_up(max(_SUBLANES, min(tile_b, B)), _SUBLANES)
    # v7x has two TensorCores: once >=512-row tiles are still possible, force
    # >=2 grid steps so dimension_semantics=("parallel",) can shard them.
    if B >= 2 * 512:
        tile_b = min(tile_b, _round_up(-(-B // 2), _SUBLANES))
    return tile_b


def qnet_multihead_forward(x, prepared_params, action_dim, num_heads, *,
                           tile_b=1024, batch_major=False):
    """Matches the PyTorch forward: returns (num_heads, B, action_dim).
    With batch_major=True returns (B, num_heads, action_dim) and skips the
    post-kernel transpose copy entirely (the reshape itself is a free view)."""
    w1b, b1r, w2b, b2r, w3b, b3r, whb, bhr = prepared_params
    B, obs_dim = x.shape
    out_dim = action_dim * num_heads

    tile_b = _choose_tile_b(B, tile_b)
    grid = (pl.cdiv(B, tile_b),)
    resident = lambda i: (0, 0)   # weights/biases stay in VMEM across the grid

    z = pl.pallas_call(
        qnet_multihead_kernel,
        out_shape=jax.ShapeDtypeStruct((B, out_dim), jnp.float32),
        grid=grid,
        in_specs=[
            pl.BlockSpec((tile_b, obs_dim), lambda i: (i, 0)),  # x tile (pipelined)
            pl.BlockSpec(w1b.shape, resident),
            pl.BlockSpec(b1r.shape, resident),
            pl.BlockSpec(w2b.shape, resident),
            pl.BlockSpec(b2r.shape, resident),
            pl.BlockSpec(w3b.shape, resident),
            pl.BlockSpec(b3r.shape, resident),
            pl.BlockSpec(whb.shape, resident),
            pl.BlockSpec(bhr.shape, resident),
        ],
        out_specs=pl.BlockSpec((tile_b, out_dim), lambda i: (i, 0)),
        compiler_params=pltpu.CompilerParams(
            dimension_semantics=("parallel",)),   # v7x: shard tiles over 2 TCs
    )(x, w1b, b1r, w2b, b2r, w3b, b3r, whb, bhr)

    # Columns were pre-permuted at fuse time to (head, action)-major order, so
    # this reshape is a free view of the kernel output.
    z = z.reshape(B, num_heads, action_dim)
    if batch_major:
        return z
    return z.transpose(1, 0, 2)   # PyTorch layout: (num_heads, B, action_dim)


def init_params(key, obs_dim, action_dim, num_heads):
    """Deterministic synthetic parameters with the PyTorch module's shapes.
    Linear weights stored (in, out); the grouped Conv1d head keeps its PyTorch
    layout (out_ch, 64, 1) and is fused/permuted by fuse_head_conv()."""
    out_dim = action_dim * num_heads
    ks = jax.random.split(key, 6)

    def unif(k, shape, bound):
        return jax.random.uniform(k, shape, jnp.float32, -bound, bound)

    w1 = unif(ks[0], (obs_dim, 256), obs_dim ** -0.5)
    b1 = jnp.full((256,), 0.1, jnp.float32)             # constant_(bias, 0.1)
    w2 = unif(ks[1], (256, 128), 256 ** -0.5)
    b2 = jnp.full((128,), 0.1, jnp.float32)             # constant_(bias, 0.1)
    w3 = unif(ks[2], (128, 64), 0.003)                  # uniform_(-0.003, 0.003)
    b3 = unif(ks[3], (64,), 0.003)                      # uniform_(-0.003, 0.003)
    conv_w = unif(ks[4], (out_dim, 64, 1), 64 ** -0.5)  # Conv1d default scale
    conv_b = unif(ks[5], (out_dim,), 64 ** -0.5)
    return (w1, b1, w2, b2, w3, b3, conv_w, conv_b)


def reference_forward(x, raw_params, action_dim, num_heads, *, bf16_matmuls=False):
    """Pure-JAX mirror of the PyTorch forward, using the raw (un-fused,
    un-permuted) parameter layout and the module's own view/permute."""
    w1, b1, w2, b2, w3, b3, conv_w, conv_b = raw_params

    def mm(a, w):
        if bf16_matmuls:
            a, w = a.astype(jnp.bfloat16), w.astype(jnp.bfloat16)
        return jnp.dot(a, w, preferred_element_type=jnp.float32)

    h = jnp.maximum(mm(x, w1) + b1, 0.0)
    h = jnp.maximum(mm(h, w2) + b2, 0.0)
    h = jnp.maximum(mm(h, w3) + b3, 0.0)                # F.relu(self.model(x))
    # grouped 1x1 conv over head-replicated features == dense matmul with the
    # per-channel 64-vectors; channels in conv order c = head*action_dim + a.
    conv_out = mm(h, jnp.transpose(conv_w[:, :, 0], (1, 0))) + conv_b
    B = x.shape[0]
    return conv_out.reshape(B, action_dim, num_heads).transpose(2, 0, 1)


if __name__ == "__main__":
    B, obs_dim, action_dim, num_heads = 8, 32, 4, 3
    # NOTE: at B=8 the call is dispatch/DMA-latency dominated on every TPU
    # generation; the batch tiling above is what lets it scale to large B.

    key = jax.random.PRNGKey(0)
    kx, kp = jax.random.split(key)
    x = jax.random.normal(kx, (B, obs_dim), jnp.float32)

    raw = init_params(kp, obs_dim, action_dim, num_heads)
    ew_dtype = elementwise_dtype_for_backend()
    prepared = prepare_params(raw, action_dim, num_heads, ew_dtype)  # hoisted, once

    fwd = jax.jit(functools.partial(
        qnet_multihead_forward, action_dim=action_dim, num_heads=num_heads))
    out = jax.block_until_ready(fwd(x, prepared))

    assert out.shape == (num_heads, B, action_dim), out.shape

    # Tight check vs a reference that mirrors the kernel's bf16 matmul operands.
    ref_bf16 = reference_forward(x, raw, action_dim, num_heads, bf16_matmuls=True)
    assert jnp.allclose(out, ref_bf16, atol=2e-3, rtol=2e-3), \
        float(jnp.max(jnp.abs(out - ref_bf16)))
    # Loose check vs the pure-f32 PyTorch-equivalent reference.
    ref_f32 = reference_forward(x, raw, action_dim, num_heads, bf16_matmuls=False)
    assert jnp.allclose(out, ref_f32, atol=3e-2, rtol=3e-2), \
        float(jnp.max(jnp.abs(out - ref_f32)))

    print("KERNEL_OK")
</pallas_src>

<mosaic_0001>
module attributes {stable_mosaic.version = 11 : i64} {
  func.func @qnet_multihead_kernel(%arg0: i32, %arg1: memref<8x32xf32, #tpu.memory_space<vmem>>, %arg2: memref<32x256xbf16, #tpu.memory_space<vmem>>, %arg3: memref<1x256xf32, #tpu.memory_space<vmem>>, %arg4: memref<256x128xbf16, #tpu.memory_space<vmem>>, %arg5: memref<1x128xf32, #tpu.memory_space<vmem>>, %arg6: memref<128x64xbf16, #tpu.memory_space<vmem>>, %arg7: memref<1x64xf32, #tpu.memory_space<vmem>>, %arg8: memref<64x12xbf16, #tpu.memory_space<vmem>>, %arg9: memref<1x12xf32, #tpu.memory_space<vmem>>, %arg10: memref<8x12xf32, #tpu.memory_space<vmem>>) attributes {dimension_semantics = [#tpu.dimension_semantics<parallel>], iteration_bounds = array<i64: 1>, scalar_prefetch = 0 : i64, scratch_operands = 0 : i64, tpu.core_type = #tpu.core_type<tc>, window_params = [{transform_indices = @transform_0, window_bounds = array<i64: 8, 32>}, {pipeline_mode = #tpu.pipeline_mode<synchronous>, transform_indices = @transform_1, window_bounds = array<i64: 32, 256>}, {pipeline_mode = #tpu.pipeline_mode<synchronous>, transform_indices = @transform_2, window_bounds = array<i64: 1, 256>}, {pipeline_mode = #tpu.pipeline_mode<synchronous>, transform_indices = @transform_3, window_bounds = array<i64: 256, 128>}, {pipeline_mode = #tpu.pipeline_mode<synchronous>, transform_indices = @transform_4, window_bounds = array<i64: 1, 128>}, {pipeline_mode = #tpu.pipeline_mode<synchronous>, transform_indices = @transform_5, window_bounds = array<i64: 128, 64>}, {pipeline_mode = #tpu.pipeline_mode<synchronous>, transform_indices = @transform_6, window_bounds = array<i64: 1, 64>}, {pipeline_mode = #tpu.pipeline_mode<synchronous>, transform_indices = @transform_7, window_bounds = array<i64: 64, 12>}, {pipeline_mode = #tpu.pipeline_mode<synchronous>, transform_indices = @transform_8, window_bounds = array<i64: 1, 12>}, {transform_indices = @transform_9, window_bounds = array<i64: 8, 12>}]} {
    %c0 = arith.constant 0 : index
    %c0_0 = arith.constant 0 : index
    %0 = vector.load %arg1[%c0, %c0_0] : memref<8x32xf32, #tpu.memory_space<vmem>>, vector<8x32xf32>
    %1 = arith.truncf %0 : vector<8x32xf32> to vector<8x32xbf16>
    %c0_1 = arith.constant 0 : index
    %c0_2 = arith.constant 0 : index
    %2 = vector.load %arg2[%c0_1, %c0_2] : memref<32x256xbf16, #tpu.memory_space<vmem>>, vector<32x256xbf16>
    %cst = arith.constant dense<0.000000e+00> : vector<8x256xf32>
    %3 = tpu.matmul %1, %2, %cst {dimension_numbers = #tpu.dot_dimension_numbers<[1], [0], [0], [1], [0, 0, 1, 1], [], []>} : vector<8x32xbf16>, vector<32x256xbf16>, vector<8x256xf32> -> vector<8x256xf32>
    %c0_3 = arith.constant 0 : index
    %c0_4 = arith.constant 0 : index
    %4 = vector.load %arg3[%c0_3, %c0_4] : memref<1x256xf32, #tpu.memory_space<vmem>>, vector<1x256xf32>
    %5 = vector.broadcast %4 : vector<1x256xf32> to vector<8x256xf32>
    %6 = arith.addf %3, %5 : vector<8x256xf32>
    %cst_5 = arith.constant 0.000000e+00 : f32
    %7 = vector.broadcast %cst_5 : f32 to vector<8x256xf32>
    %8 = arith.maximumf %6, %7 : vector<8x256xf32>
    %9 = arith.truncf %8 : vector<8x256xf32> to vector<8x256xbf16>
    %c0_6 = arith.constant 0 : index
    %c0_7 = arith.constant 0 : index
    %10 = vector.load %arg4[%c0_6, %c0_7] : memref<256x128xbf16, #tpu.memory_space<vmem>>, vector<256x128xbf16>
    %cst_8 = arith.constant dense<0.000000e+00> : vector<8x128xf32>
    %11 = tpu.matmul %9, %10, %cst_8 {dimension_numbers = #tpu.dot_dimension_numbers<[1], [0], [0], [1], [0, 0, 1, 1], [], []>} : vector<8x256xbf16>, vector<256x128xbf16>, vector<8x128xf32> -> vector<8x128xf32>
    %c0_9 = arith.constant 0 : index
    %c0_10 = arith.constant 0 : index
    %12 = vector.load %arg5[%c0_9, %c0_10] : memref<1x128xf32, #tpu.memory_space<vmem>>, vector<1x128xf32>
    %13 = vector.broadcast %12 : vector<1x128xf32> to vector<8x128xf32>
    %14 = arith.addf %11, %13 : vector<8x128xf32>
    %cst_11 = arith.constant 0.000000e+00 : f32
    %15 = vector.broadcast %cst_11 : f32 to vector<8x128xf32>
    %16 = arith.maximumf %14, %15 : vector<8x128xf32>
    %17 = arith.truncf %16 : vector<8x128xf32> to vector<8x128xbf16>
    %c0_12 = arith.constant 0 : index
    %c0_13 = arith.constant 0 : index
    %18 = vector.load %arg6[%c0_12, %c0_13] : memref<128x64xbf16, #tpu.memory_space<vmem>>, vector<128x64xbf16>
    %cst_14 = arith.constant dense<0.000000e+00> : vector<8x64xf32>
    %19 = tpu.matmul %17, %18, %cst_14 {dimension_numbers = #tpu.dot_dimension_numbers<[1], [0], [0], [1], [0, 0, 1, 1], [], []>} : vector<8x128xbf16>, vector<128x64xbf16>, vector<8x64xf32> -> vector<8x64xf32>
    %c0_15 = arith.constant 0 : index
    %c0_16 = arith.constant 0 : index
    %20 = vector.load %arg7[%c0_15, %c0_16] : memref<1x64xf32, #tpu.memory_space<vmem>>, vector<1x64xf32>
    %21 = vector.broadcast %20 : vector<1x64xf32> to vector<8x64xf32>
    %22 = arith.addf %19, %21 : vector<8x64xf32>
    %cst_17 = arith.constant 0.000000e+00 : f32
    %23 = vector.broadcast %cst_17 : f32 to vector<8x64xf32>
    %24 = arith.maximumf %22, %23 : vector<8x64xf32>
    %25 = arith.truncf %24 : vector<8x64xf32> to vector<8x64xbf16>
    %c0_18 = arith.constant 0 : index
    %c0_19 = arith.constant 0 : index
    %26 = vector.load %arg8[%c0_18, %c0_19] : memref<64x12xbf16, #tpu.memory_space<vmem>>, vector<64x12xbf16>
    %cst_20 = arith.constant dense<0.000000e+00> : vector<8x12xf32>
    %27 = tpu.matmul %25, %26, %cst_20 {dimension_numbers = #tpu.dot_dimension_numbers<[1], [0], [0], [1], [0, 0, 1, 1], [], []>} : vector<8x64xbf16>, vector<64x12xbf16>, vector<8x12xf32> -> vector<8x12xf32>
    %c0_21 = arith.constant 0 : index
    %c0_22 = arith.constant 0 : index
    %28 = vector.load %arg9[%c0_21, %c0_22] : memref<1x12xf32, #tpu.memory_space<vmem>>, vector<1x12xf32>
    %29 = vector.broadcast %28 : vector<1x12xf32> to vector<8x12xf32>
    %30 = arith.addf %27, %29 : vector<8x12xf32>
    %c0_23 = arith.constant 0 : index
    %c0_24 = arith.constant 0 : index
    %31 = vector.load %arg10[%c0_23, %c0_24] : memref<8x12xf32, #tpu.memory_space<vmem>>, vector<8x12xf32>
    tpu.vector_store %arg10[%c0_23, %c0_24], %30 {strides = array<i32>} : memref<8x12xf32, #tpu.memory_space<vmem>>, vector<8x12xf32>,
    return
  }
  func.func @transform_0(%arg0: i32) -> (i32, i32) {
    %c0_i32 = arith.constant 0 : i32
    %c0_i32_0 = arith.constant 0 : i32
    return %arg0, %c0_i32 : i32, i32
  }
  func.func @transform_1(%arg0: i32) -> (i32, i32) {
    %c0_i32 = arith.constant 0 : i32
    %c0_i32_0 = arith.constant 0 : i32
    %c0_i32_1 = arith.constant 0 : i32
    return %c0_i32, %c0_i32_0 : i32, i32
  }
  func.func @transform_2(%arg0: i32) -> (i32, i32) {
    %c0_i32 = arith.constant 0 : i32
    %c0_i32_0 = arith.constant 0 : i32
    %c0_i32_1 = arith.constant 0 : i32
    return %c0_i32, %c0_i32_0 : i32, i32
  }
  func.func @transform_3(%arg0: i32) -> (i32, i32) {
    %c0_i32 = arith.constant 0 : i32
    %c0_i32_0 = arith.constant 0 : i32
    %c0_i32_1 = arith.constant 0 : i32
    return %c0_i32, %c0_i32_0 : i32, i32
  }
  func.func @transform_4(%arg0: i32) -> (i32, i32) {
    %c0_i32 = arith.constant 0 : i32
    %c0_i32_0 = arith.constant 0 : i32
    %c0_i32_1 = arith.constant 0 : i32
    return %c0_i32, %c0_i32_0 : i32, i32
  }
  func.func @transform_5(%arg0: i32) -> (i32, i32) {
    %c0_i32 = arith.constant 0 : i32
    %c0_i32_0 = arith.constant 0 : i32
    %c0_i32_1 = arith.constant 0 : i32
    return %c0_i32, %c0_i32_0 : i32, i32
  }
  func.func @transform_6(%arg0: i32) -> (i32, i32) {
    %c0_i32 = arith.constant 0 : i32
    %c0_i32_0 = arith.constant 0 : i32
    %c0_i32_1 = arith.constant 0 : i32
    return %c0_i32, %c0_i32_0 : i32, i32
  }
  func.func @transform_7(%arg0: i32) -> (i32, i32) {
    %c0_i32 = arith.constant 0 : i32
    %c0_i32_0 = arith.constant 0 : i32
    %c0_i32_1 = arith.constant 0 : i32
    return %c0_i32, %c0_i32_0 : i32, i32
  }
  func.func @transform_8(%arg0: i32) -> (i32, i32) {
    %c0_i32 = arith.constant 0 : i32
    %c0_i32_0 = arith.constant 0 : i32
    %c0_i32_1 = arith.constant 0 : i32
    return %c0_i32, %c0_i32_0 : i32, i32
  }
  func.func @transform_9(%arg0: i32) -> (i32, i32) {
    %c0_i32 = arith.constant 0 : i32
    %c0_i32_0 = arith.constant 0 : i32
    return %arg0, %c0_i32 : i32, i32
  }
}

</mosaic_0001>

<llo_original>
// kernel: qnet_multihead_forward.1
$region0: #{qnet_multihead_forward.1}
  #allocation0 [shape = 'u32[]', space=smem, size = 0x4, offset = 0x4, fixed_abs, tag = 'smem constant byte address 0x4 - core index']
  #allocation1 [shape = 'u32[144,128]{1,0:T(1,128)}', space=vmem, size = 0x12000, scoped, tag = 'internal scratch']
  %s0 = inlined_call_operand.vmem [shape: f32[8,32], index: 0, kind: input, shape index: {}]
  %s1 = inlined_call_operand.hbm [shape: bf16[32,256], index: 1, kind: input, shape index: {}]
  %s2 = inlined_call_operand.vmem [shape: f32[1,256], index: 2, kind: input, shape index: {}]
  %s3 = inlined_call_operand.vmem [shape: bf16[256,128], index: 3, kind: input, shape index: {}]
  %s4 = inlined_call_operand.vmem [shape: f32[1,128], index: 4, kind: input, shape index: {}]
  %s5 = inlined_call_operand.vmem [shape: bf16[128,64], index: 5, kind: input, shape index: {}]
  %s6 = inlined_call_operand.vmem [shape: f32[1,64], index: 6, kind: input, shape index: {}]
  %s7 = inlined_call_operand.vmem [shape: bf16[64,12], index: 7, kind: input, shape index: {}]
  %s8 = inlined_call_operand.vmem [shape: f32[1,12], index: 8, kind: input, shape index: {}]
  %s9 = inlined_call_operand.vmem [shape: f32[8,12], index: 9, kind: output, shape index: {}]
  %s10 = sld [smem:[#allocation0]]
  $region50: #{qnet_multihead_forward.1} parent=0
    _
  %s12 = ssub.s32 1, %s10
  %s13 = scalar_select 0, %s12, %s10
  $region1: #{qnet_multihead_forward.1} parent=0
    #allocation2 [shape = 'u8[16384]{0}', space=vmem, size = 0x4000, scoped, tag = 'input window, operand 1, single buffered']
    #allocation3 [shape = 's32[1]{0}', space=sflag, size = 0x4, scoped, tag = 'scoped memory for qnet_multihead_forward.1']
    %14 = vsyncpa [#allocation3], 0
    // Predicated region
    $region2: #{qnet_multihead_forward.1} parent=1 // pred_check
      _
    $region3: #{qnet_multihead_forward.1} parent=1 // pred_check_branch
      %16 = sbr.rel (0) target = $region5
    $region4: #{qnet_multihead_forward.1} parent=1 // pred_region
      _
    $region5: #{qnet_multihead_forward.1} parent=1 // pred_fallthru
      _
    // Predicated region
    $region6: #{qnet_multihead_forward.1} parent=1 // pred_check
      _
    $region7: #{qnet_multihead_forward.1} parent=1 // pred_check_branch
      %18 = sbr.rel (0) target = $region9
    $region8: #{qnet_multihead_forward.1} parent=1 // pred_region
      %s20 = ssub.s32 512, 512
      %21 = vsyncadd [#allocation3], %s20
      %s22 = sshll.u32 [#allocation2], 4
      %s23 = int_to_ptr.vmem [resolvable:$true] %s22
      %28 = dma.hbm_to_vmem [thread:$0]  %s1, 512, %s23, [#allocation3], 128, 128, 8
    $region9: #{qnet_multihead_forward.1} parent=1 // pred_fallthru
      _
    // Predicated region
    $region10: #{qnet_multihead_forward.1} parent=1 // pred_check
      _
    $region11: #{qnet_multihead_forward.1} parent=1 // pred_check_branch
      %30 = sbr.rel (0) target = $region13
    $region12: #{qnet_multihead_forward.1} parent=1 // pred_region
      _
    $region13: #{qnet_multihead_forward.1} parent=1 // pred_fallthru
      _
    // Predicated region
    $region14: #{qnet_multihead_forward.1} parent=1 // pred_check
      _
    $region15: #{qnet_multihead_forward.1} parent=1 // pred_check_branch
      %32 = sbr.rel (0) target = $region17
    $region16: #{qnet_multihead_forward.1} parent=1 // pred_region
      _
    $region17: #{qnet_multihead_forward.1} parent=1 // pred_fallthru
      _
    // Predicated region
    $region18: #{qnet_multihead_forward.1} parent=1 // pred_check
      _
    $region19: #{qnet_multihead_forward.1} parent=1 // pred_check_branch
      %34 = sbr.rel (0) target = $region21
    $region20: #{qnet_multihead_forward.1} parent=1 // pred_region
      _
    $region21: #{qnet_multihead_forward.1} parent=1 // pred_fallthru
      _
    // Predicated region
    $region22: #{qnet_multihead_forward.1} parent=1 // pred_check
      _
    $region23: #{qnet_multihead_forward.1} parent=1 // pred_check_branch
      %36 = sbr.rel (0) target = $region25
    $region24: #{qnet_multihead_forward.1} parent=1 // pred_region
      _
    $region25: #{qnet_multihead_forward.1} parent=1 // pred_fallthru
      _
    // Predicated region
    $region26: #{qnet_multihead_forward.1} parent=1 // pred_check
      _
    $region27: #{qnet_multihead_forward.1} parent=1 // pred_check_branch
      %38 = sbr.rel (0) target = $region29
    $region28: #{qnet_multihead_forward.1} parent=1 // pred_region
      _
    $region29: #{qnet_multihead_forward.1} parent=1 // pred_fallthru
      _
    // Predicated region
    $region30: #{qnet_multihead_forward.1} parent=1 // pred_check
      _
    $region31: #{qnet_multihead_forward.1} parent=1 // pred_check_branch
      %40 = sbr.rel (0) target = $region33
    $region32: #{qnet_multihead_forward.1} parent=1 // pred_region
      _
    $region33: #{qnet_multihead_forward.1} parent=1 // pred_fallthru
      _
    // Predicated region
    $region34: #{qnet_multihead_forward.1} parent=1 // pred_check
      _
    $region35: #{qnet_multihead_forward.1} parent=1 // pred_check_branch
      %42 = sbr.rel (0) target = $region37
    $region36: #{qnet_multihead_forward.1} parent=1 // pred_region
      _
    $region37: #{qnet_multihead_forward.1} parent=1 // pred_fallthru
      _
    // Predicated region
    $region38: #{qnet_multihead_forward.1} parent=1 // pred_check
      _
    $region39: #{qnet_multihead_forward.1} parent=1 // pred_check_branch
      %44 = sbr.rel (0) target = $region41
    $region40: #{qnet_multihead_forward.1} parent=1 // pred_region
      %45 = dma.done [#allocation3], 512
    $region41: #{qnet_multihead_forward.1} parent=1 // pred_fallthru
      _
    %v47 = vld [vmem:[%s0] sm:$0xff]
    %v48 = vpack.c.bf16 %v47, %v47
    %v49 = vld [vmem:[#allocation2] sm:$0xff]
    %v50 = vld [vmem:[#allocation2 + $0x8] sm:$0xff]
    %v51 = vld [vmem:[#allocation2 + $0x10] sm:$0xff]
    %v52 = vld [vmem:[#allocation2 + $0x18] sm:$0xff]
    %v53 = vld [vmem:[%s2] sm:$0x3]
    %v55 = vlaneseq
    %v56 = vshrl.u32 %v55, 7
    %v57 = vsub.s32 0, %v56
    %v58 = vrot.slane %v53, %v57
    %v59 = vlaneseq
    %v60 = vshrl.u32 %v59, 7
    %v61 = vsub.s32 1, %v60
    %v62 = vrot.slane %v53, %v61
    %v69 = vunpack.c.l.b16 %v49
    %v70 = vunpack.c.h.b16 %v49
    %v71 = vunpack.c.l.b16 %v50
    %v72 = vunpack.c.h.b16 %v50
    %v73 = vunpack.c.l.b16 %v51
    %v74 = vunpack.c.h.b16 %v51
    %v75 = vunpack.c.l.b16 %v52
    %v76 = vunpack.c.h.b16 %v52
    %v77 = vpack.c.b16 %v71, %v69
    %v78 = vpack.c.b16 %v72, %v70
    %v79 = vpack.c.b16 %v75, %v73
    %v80 = vpack.c.b16 %v76, %v74
    %vm85 = vcmask 261120
    %v87 = vsel %vm85, %v48, 0
    %89 = vmatprep.subr.bf16.mxu0 0
    %90 = vmatpush1.bf16.msra.mxu0 0
    %91 = vmatprep.subr.bf16.mxu0 0
    %92 = vmatpush1.bf16.msra.mxu0 0
    %93 = vmatprep.subr.bf16.mxu0 0
    %94 = vmatpush1.bf16.msra.mxu0 0
    %95 = vmatprep.subr.bf16.mxu0 0
    %96 = vmatpush1.bf16.msra.mxu0 0
    %97 = vmatprep.subr.bf16.mxu0 0
    %98 = vmatpush1.bf16.msra.mxu0 0
    %99 = vmatprep.subr.bf16.mxu0 0
    %100 = vmatpush1.bf16.msra.mxu0 0
    %101 = vmatprep.subr.bf16.mxu0 %v80
    %102 = vmatpush1.bf16.msra.mxu0 %v79
    %103 = vmatprep.subr.bf16.mxu0 %v78
    %104 = vmatpush1.bf16.msra.mxu0 %v77
    %105 = vmatprep.subr.bf16.mxu0 0
    %106 = vmatpush2.bf16.msra.mxu0 0
    %107 = vmatprep.subr.bf16.mxu0 0
    %108 = vmatpush2.bf16.msra.mxu0 0
    %109 = vmatprep.subr.bf16.mxu0 0
    %110 = vmatpush2.bf16.msra.mxu0 0
    %111 = vmatprep.subr.bf16.mxu0 0
    %112 = vmatpush2.bf16.msra.mxu0 0
    %113 = vmatprep.subr.bf16.mxu0 0
    %114 = vmatpush2.bf16.msra.mxu0 0
    %115 = vmatprep.subr.bf16.mxu0 0
    %116 = vmatpush2.bf16.msra.mxu0 0
    %117 = vmatprep.subr.bf16.mxu0 0
    %118 = vmatpush2.bf16.msra.mxu0 0
    %119 = vmatprep.subr.bf16.mxu0 0
    %120 = vmatpush2.bf16.msra.mxu0 0
    %121 = vmatprep.mubr.bf16.mxu0 0
    %122 = vmatmul.mubr.bf16.gmra.mxu0 %v87
    %v123 = vpop.f32.mrf.mxu0
    %v124 = vadd.f32 %v58, %v123
    %v125 = vpop.f32.mrf.mxu0
    %v126 = vadd.f32 %v62, %v125
    %v127 = vpop.f32.mrf.mxu0
    %v128 = vpop.f32.mrf.mxu0
    %129 = vdwg.mxu0
    %v130 = vmax.f32 %v124, 0.0
    %v131 = vmax.f32 %v126, 0.0
    %v132 = vpack.c.bf16 %v130, %v130
    %v133 = vpack.c.bf16 %v131, %v131
    %v134 = vld [vmem:[%s3] sm:$0xf]
    %v135 = vld [vmem:[%s3 + $0x4] sm:$0xf]
    %v136 = vld [vmem:[%s3 + $0x8] sm:$0xf]
    %v137 = vld [vmem:[%s3 + $0xc] sm:$0xf]
    %v138 = vld [vmem:[%s3 + $0x10] sm:$0xf]
    %v139 = vld [vmem:[%s3 + $0x14] sm:$0xf]
    %v140 = vld [vmem:[%s3 + $0x18] sm:$0xf]
    %v141 = vld [vmem:[%s3 + $0x1c] sm:$0xf]
    %v142 = vld [vmem:[%s3 + $0x20] sm:$0xf]
    %v143 = vld [vmem:[%s3 + $0x24] sm:$0xf]
    %v144 = vld [vmem:[%s3 + $0x28] sm:$0xf]
    %v145 = vld [vmem:[%s3 + $0x2c] sm:$0xf]
    %v146 = vld [vmem:[%s3 + $0x30] sm:$0xf]
    %v147 = vld [vmem:[%s3 + $0x34] sm:$0xf]
    %v148 = vld [vmem:[%s3 + $0x38] sm:$0xf]
    %v149 = vld [vmem:[%s3 + $0x3c] sm:$0xf]
    %v150 = vld [vmem:[%s3 + $0x40] sm:$0xf]
    %v151 = vld [vmem:[%s3 + $0x44] sm:$0xf]
    %v152 = vld [vmem:[%s3 + $0x48] sm:$0xf]
    %v153 = vld [vmem:[%s3 + $0x4c] sm:$0xf]
    %v154 = vld [vmem:[%s3 + $0x50] sm:$0xf]
    %v155 = vld [vmem:[%s3 + $0x54] sm:$0xf]
    %v156 = vld [vmem:[%s3 + $0x58] sm:$0xf]
    %v157 = vld [vmem:[%s3 + $0x5c] sm:$0xf]
    %v158 = vld [vmem:[%s3 + $0x60] sm:$0xf]
    %v159 = vld [vmem:[%s3 + $0x64] sm:$0xf]
    %v160 = vld [vmem:[%s3 + $0x68] sm:$0xf]
    %v161 = vld [vmem:[%s3 + $0x6c] sm:$0xf]
    %v162 = vld [vmem:[%s3 + $0x70] sm:$0xf]
    %v163 = vld [vmem:[%s3 + $0x74] sm:$0xf]
    %v164 = vld [vmem:[%s3 + $0x78] sm:$0xf]
    %v165 = vld [vmem:[%s3 + $0x7c] sm:$0xf]
    %v166 = vld [vmem:[%s4] sm:$0x1]
    %v168 = vlaneseq
    %v169 = vshrl.u32 %v168, 7
    %v170 = vsub.s32 0, %v169
    %v171 = vrot.slane %v166, %v170
    %v205 = vunpack.c.l.b16 %v134
    %v206 = vunpack.c.l.b16 %v135
    %v207 = vunpack.c.l.b16 %v136
    %v208 = vunpack.c.l.b16 %v137
    %v209 = vunpack.c.l.b16 %v138
    %v210 = vunpack.c.l.b16 %v139
    %v211 = vunpack.c.l.b16 %v140
    %v212 = vunpack.c.l.b16 %v141
    %v213 = vunpack.c.l.b16 %v142
    %v214 = vunpack.c.l.b16 %v143
    %v215 = vunpack.c.l.b16 %v144
    %v216 = vunpack.c.l.b16 %v145
    %v217 = vunpack.c.l.b16 %v146
    %v218 = vunpack.c.l.b16 %v147
    %v219 = vunpack.c.l.b16 %v148
    %v220 = vunpack.c.l.b16 %v149
    %v221 = vunpack.c.l.b16 %v150
    %v222 = vunpack.c.l.b16 %v151
    %v223 = vunpack.c.l.b16 %v152
    %v224 = vunpack.c.l.b16 %v153
    %v225 = vunpack.c.l.b16 %v154
    %v226 = vunpack.c.l.b16 %v155
    %v227 = vunpack.c.l.b16 %v156
    %v228 = vunpack.c.l.b16 %v157
    %v229 = vunpack.c.l.b16 %v158
    %v230 = vunpack.c.l.b16 %v159
    %v231 = vunpack.c.l.b16 %v160
    %v232 = vunpack.c.l.b16 %v161
    %v233 = vunpack.c.l.b16 %v162
    %v234 = vunpack.c.l.b16 %v163
    %v235 = vunpack.c.l.b16 %v164
    %v236 = vunpack.c.l.b16 %v165
    %v237 = vpack.c.b16 %v206, %v205
    %v238 = vpack.c.b16 %v208, %v207
    %v239 = vpack.c.b16 %v210, %v209
    %v240 = vpack.c.b16 %v212, %v211
    %v241 = vpack.c.b16 %v214, %v213
    %v242 = vpack.c.b16 %v216, %v215
    %v243 = vpack.c.b16 %v218, %v217
    %v244 = vpack.c.b16 %v220, %v219
    %v245 = vpack.c.b16 %v222, %v221
    %v246 = vpack.c.b16 %v224, %v223
    %v247 = vpack.c.b16 %v226, %v225
    %v248 = vpack.c.b16 %v228, %v227
    %v249 = vpack.c.b16 %v230, %v229
    %v250 = vpack.c.b16 %v232, %v231
    %v251 = vpack.c.b16 %v234, %v233
    %v252 = vpack.c.b16 %v236, %v235
    %269 = vmatprep.subr.bf16.mxu0 0
    %270 = vmatpush1.bf16.msra.mxu0 %v244
    %271 = vmatprep.subr.bf16.mxu0 0
    %272 = vmatpush1.bf16.msra.mxu0 %v243
    %273 = vmatprep.subr.bf16.mxu0 0
    %274 = vmatpush1.bf16.msra.mxu0 %v242
    %275 = vmatprep.subr.bf16.mxu0 0
    %276 = vmatpush1.bf16.msra.mxu0 %v241
    %277 = vmatprep.subr.bf16.mxu0 0
    %278 = vmatpush1.bf16.msra.mxu0 %v240
    %279 = vmatprep.subr.bf16.mxu0 0
    %280 = vmatpush1.bf16.msra.mxu0 %v239
    %281 = vmatprep.subr.bf16.mxu0 0
    %282 = vmatpush1.bf16.msra.mxu0 %v238
    %283 = vmatprep.subr.bf16.mxu0 0
    %284 = vmatpush1.bf16.msra.mxu0 %v237
    %285 = vmatprep.subr.bf16.mxu0 0
    %286 = vmatpush2.bf16.msra.mxu0 %v252
    %287 = vmatprep.subr.bf16.mxu0 0
    %288 = vmatpush2.bf16.msra.mxu0 %v251
    %289 = vmatprep.subr.bf16.mxu0 0
    %290 = vmatpush2.bf16.msra.mxu0 %v250
    %291 = vmatprep.subr.bf16.mxu0 0
    %292 = vmatpush2.bf16.msra.mxu0 %v249
    %293 = vmatprep.subr.bf16.mxu0 0
    %294 = vmatpush2.bf16.msra.mxu0 %v248
    %295 = vmatprep.subr.bf16.mxu0 0
    %296 = vmatpush2.bf16.msra.mxu0 %v247
    %297 = vmatprep.subr.bf16.mxu0 0
    %298 = vmatpush2.bf16.msra.mxu0 %v246
    %299 = vmatprep.subr.bf16.mxu0 0
    %300 = vmatpush2.bf16.msra.mxu0 %v245
    %301 = vmatprep.mubr.bf16.mxu0 %v133
    %302 = vmatmul.mubr.bf16.gmra.mxu0 %v132
    %v303 = vpop.f32.mrf.mxu0
    %v304 = vadd.f32 %v171, %v303
    %v305 = vpop.f32.mrf.mxu0
    %v306 = vpop.f32.mrf.mxu0
    %v307 = vpop.f32.mrf.mxu0
    %308 = vdwg.mxu0
    %v309 = vmax.f32 %v304, 0.0
    %v310 = vpack.c.bf16 %v309, %v309
    %v311 = vld [vmem:[%s5] sm:$0xf]
    %v312 = vld [vmem:[%s5 + $0x4] sm:$0xf]
    %v313 = vld [vmem:[%s5 + $0x8] sm:$0xf]
    %v314 = vld [vmem:[%s5 + $0xc] sm:$0xf]
    %v315 = vld [vmem:[%s5 + $0x10] sm:$0xf]
    %v316 = vld [vmem:[%s5 + $0x14] sm:$0xf]
    %v317 = vld [vmem:[%s5 + $0x18] sm:$0xf]
    %v318 = vld [vmem:[%s5 + $0x1c] sm:$0xf]
    %v319 = vld [vmem:[%s5 + $0x20] sm:$0xf]
    %v320 = vld [vmem:[%s5 + $0x24] sm:$0xf]
    %v321 = vld [vmem:[%s5 + $0x28] sm:$0xf]
    %v322 = vld [vmem:[%s5 + $0x2c] sm:$0xf]
    %v323 = vld [vmem:[%s5 + $0x30] sm:$0xf]
    %v324 = vld [vmem:[%s5 + $0x34] sm:$0xf]
    %v325 = vld [vmem:[%s5 + $0x38] sm:$0xf]
    %v326 = vld [vmem:[%s5 + $0x3c] sm:$0xf]
    %v327 = vld [vmem:[%s6] sm:$0x1]
    %v329 = vlaneseq
    %v330 = vshrl.u32 %v329, 7
    %v331 = vsub.s32 0, %v330
    %v332 = vrot.slane %v327, %v331
    %v350 = vunpack.c.l.b16 %v311
    %v351 = vunpack.c.l.b16 %v312
    %v352 = vunpack.c.l.b16 %v313
    %v353 = vunpack.c.l.b16 %v314
    %v354 = vunpack.c.l.b16 %v315
    %v355 = vunpack.c.l.b16 %v316
    %v356 = vunpack.c.l.b16 %v317
    %v357 = vunpack.c.l.b16 %v318
    %v358 = vunpack.c.l.b16 %v319
    %v359 = vunpack.c.l.b16 %v320
    %v360 = vunpack.c.l.b16 %v321
    %v361 = vunpack.c.l.b16 %v322
    %v362 = vunpack.c.l.b16 %v323
    %v363 = vunpack.c.l.b16 %v324
    %v364 = vunpack.c.l.b16 %v325
    %v365 = vunpack.c.l.b16 %v326
    %v366 = vpack.c.b16 %v351, %v350
    %v367 = vpack.c.b16 %v353, %v352
    %v368 = vpack.c.b16 %v355, %v354
    %v369 = vpack.c.b16 %v357, %v356
    %v370 = vpack.c.b16 %v359, %v358
    %v371 = vpack.c.b16 %v361, %v360
    %v372 = vpack.c.b16 %v363, %v362
    %v373 = vpack.c.b16 %v365, %v364
    %382 = vmatprep.subr.bf16.mxu0 0
    %383 = vmatpush1.bf16.msra.mxu0 %v373
    %384 = vmatprep.subr.bf16.mxu0 0
    %385 = vmatpush1.bf16.msra.mxu0 %v372
    %386 = vmatprep.subr.bf16.mxu0 0
    %387 = vmatpush1.bf16.msra.mxu0 %v371
    %388 = vmatprep.subr.bf16.mxu0 0
    %389 = vmatpush1.bf16.msra.mxu0 %v370
    %390 = vmatprep.subr.bf16.mxu0 0
    %391 = vmatpush1.bf16.msra.mxu0 %v369
    %392 = vmatprep.subr.bf16.mxu0 0
    %393 = vmatpush1.bf16.msra.mxu0 %v368
    %394 = vmatprep.subr.bf16.mxu0 0
    %395 = vmatpush1.bf16.msra.mxu0 %v367
    %396 = vmatprep.subr.bf16.mxu0 0
    %397 = vmatpush1.bf16.msra.mxu0 %v366
    %398 = vmatprep.subr.bf16.mxu0 0
    %399 = vmatpush2.bf16.msra.mxu0 0
    %400 = vmatprep.subr.bf16.mxu0 0
    %401 = vmatpush2.bf16.msra.mxu0 0
    %402 = vmatprep.subr.bf16.mxu0 0
    %403 = vmatpush2.bf16.msra.mxu0 0
    %404 = vmatprep.subr.bf16.mxu0 0
    %405 = vmatpush2.bf16.msra.mxu0 0
    %406 = vmatprep.subr.bf16.mxu0 0
    %407 = vmatpush2.bf16.msra.mxu0 0
    %408 = vmatprep.subr.bf16.mxu0 0
    %409 = vmatpush2.bf16.msra.mxu0 0
    %410 = vmatprep.subr.bf16.mxu0 0
    %411 = vmatpush2.bf16.msra.mxu0 0
    %412 = vmatprep.subr.bf16.mxu0 0
    %413 = vmatpush2.bf16.msra.mxu0 0
    %414 = vmatprep.mubr.bf16.mxu0 0
    %415 = vmatmul.mubr.bf16.gmra.mxu0 %v310
    %v416 = vpop.f32.mrf.mxu0
    %v417 = vadd.f32 %v332, %v416
    %v418 = vpop.f32.mrf.mxu0
    %v419 = vpop.f32.mrf.mxu0
    %v420 = vpop.f32.mrf.mxu0
    %421 = vdwg.mxu0
    %v422 = vmax.f32 %v417, 0.0
    %v423 = vpack.c.bf16 %v422, %v422
    %v424 = vld [vmem:[%s7] sm:$0xf]
    %v425 = vld [vmem:[%s7 + $0x4] sm:$0xf]
    %v426 = vld [vmem:[%s7 + $0x8] sm:$0xf]
    %v427 = vld [vmem:[%s7 + $0xc] sm:$0xf]
    %v428 = vld [vmem:[%s7 + $0x10] sm:$0xf]
    %v429 = vld [vmem:[%s7 + $0x14] sm:$0xf]
    %v430 = vld [vmem:[%s7 + $0x18] sm:$0xf]
    %v431 = vld [vmem:[%s7 + $0x1c] sm:$0xf]
    %v432 = vld [vmem:[%s8] sm:$0x1]
    %v434 = vlaneseq
    %v435 = vshrl.u32 %v434, 7
    %v436 = vsub.s32 0, %v435
    %v437 = vrot.slane %v432, %v436
    %v447 = vunpack.c.l.b16 %v424
    %v448 = vunpack.c.l.b16 %v425
    %v449 = vunpack.c.l.b16 %v426
    %v450 = vunpack.c.l.b16 %v427
    %v451 = vunpack.c.l.b16 %v428
    %v452 = vunpack.c.l.b16 %v429
    %v453 = vunpack.c.l.b16 %v430
    %v454 = vunpack.c.l.b16 %v431
    %v455 = vpack.c.b16 %v448, %v447
    %v456 = vpack.c.b16 %v450, %v449
    %v457 = vpack.c.b16 %v452, %v451
    %v458 = vpack.c.b16 %v454, %v453
    %vm463 = vcmask 523264
    %v465 = vsel %vm463, %v423, 0
    %467 = vmatprep.subr.bf16.mxu0 0
    %468 = vmatpush1.bf16.msra.mxu0 0
    %469 = vmatprep.subr.bf16.mxu0 0
    %470 = vmatpush1.bf16.msra.mxu0 0
    %471 = vmatprep.subr.bf16.mxu0 0
    %472 = vmatpush1.bf16.msra.mxu0 0
    %473 = vmatprep.subr.bf16.mxu0 0
    %474 = vmatpush1.bf16.msra.mxu0 0
    %475 = vmatprep.subr.bf16.mxu0 0
    %476 = vmatpush1.bf16.msra.mxu0 %v458
    %477 = vmatprep.subr.bf16.mxu0 0
    %478 = vmatpush1.bf16.msra.mxu0 %v457
    %479 = vmatprep.subr.bf16.mxu0 0
    %480 = vmatpush1.bf16.msra.mxu0 %v456
    %481 = vmatprep.subr.bf16.mxu0 0
    %482 = vmatpush1.bf16.msra.mxu0 %v455
    %483 = vmatprep.subr.bf16.mxu0 0
    %484 = vmatpush2.bf16.msra.mxu0 0
    %485 = vmatprep.subr.bf16.mxu0 0
    %486 = vmatpush2.bf16.msra.mxu0 0
    %487 = vmatprep.subr.bf16.mxu0 0
    %488 = vmatpush2.bf16.msra.mxu0 0
    %489 = vmatprep.subr.bf16.mxu0 0
    %490 = vmatpush2.bf16.msra.mxu0 0
    %491 = vmatprep.subr.bf16.mxu0 0
    %492 = vmatpush2.bf16.msra.mxu0 0
    %493 = vmatprep.subr.bf16.mxu0 0
    %494 = vmatpush2.bf16.msra.mxu0 0
    %495 = vmatprep.subr.bf16.mxu0 0
    %496 = vmatpush2.bf16.msra.mxu0 0
    %497 = vmatprep.subr.bf16.mxu0 0
    %498 = vmatpush2.bf16.msra.mxu0 0
    %499 = vmatprep.mubr.bf16.mxu0 0
    %500 = vmatmul.mubr.bf16.gmra.mxu0 %v465
    %v501 = vpop.f32.mrf.mxu0
    %v502 = vadd.f32 %v437, %v501
    %v503 = vpop.f32.mrf.mxu0
    %v504 = vpop.f32.mrf.mxu0
    %v505 = vpop.f32.mrf.mxu0
    %506 = vdwg.mxu0
    %vm507 = vcmask 97280
    %508 = vst.msk [vmem:[%s9] sm:$0xff] %vm507, %v502
    // Predicated region
    $region42: #{qnet_multihead_forward.1} parent=1 // pred_check
      _
    $region43: #{qnet_multihead_forward.1} parent=1 // pred_check_branch
      %510 = sbr.rel (0) target = $region45
    $region44: #{qnet_multihead_forward.1} parent=1 // pred_region
      _
    $region45: #{qnet_multihead_forward.1} parent=1 // pred_fallthru
      _
    // Predicated region
    $region46: #{qnet_multihead_forward.1} parent=1 // pred_check
      _
    $region47: #{qnet_multihead_forward.1} parent=1 // pred_check_branch
      %512 = sbr.rel (0) target = $region49
    $region48: #{qnet_multihead_forward.1} parent=1 // pred_region
      _
    $region49: #{qnet_multihead_forward.1} parent=1 // pred_fallthru
      _
    %513 = vsyncpa [#allocation3], 1

</llo_original>
